<compile_context>
chip_gen: v7x
topology: tpu7x:2x2x1
jax: 0.10.0
libtpu: 0.0.40
codegen_flags: <defaults>
</compile_context>

<pallas_src>
import math

import jax
import jax.numpy as jnp
from jax.experimental import pallas as pl
from jax.experimental.pallas import tpu as pltpu


def _round_up(x, m):
    return ((x + m - 1) // m) * m


def _device_info():
    kind = ""
    try:
        kind = jax.devices()[0].device_kind.lower()
    except Exception:
        pass
    if "v7" in kind or "7x" in kind:
        # 64 MiB VMEM per TC, 2 TCs/chip -> smaller vocab tile + row split.
        return dict(row_tile=1024, vocab_tile=1024,
                    vmem_limit=48 * 1024 * 1024, row_splits=2)
    # v5e / v6e (128 MiB VMEM, 1 TC) and unknown devices.
    return dict(row_tile=1024, vocab_tile=2048,
                vmem_limit=96 * 1024 * 1024, row_splits=1)


# ----------------------------------------------------------------------------
# Pallas kernel: fused  y = log_softmax(x @ W + b, axis=-1)
# grid = (row_splits, 2 phases, vocab_tiles, row_tiles)   -- row tiles innermost
#   phase 0: accumulate lane-blocked running max m / running sum l for ALL rows
#   phase 1: recompute the logits tile and write  logits - lse  (lane-dense)
# Because row tiles are the innermost axis, the W vocab tile (block index (0,j))
# only changes when j changes -> W is DMA'd ~2x total, not 2*nm times.
# ----------------------------------------------------------------------------
def _linear_logsoftmax_kernel(x_ref, w_ref, b_ref, o_ref, m_ref, l_ref, lse_ref):
    p = pl.program_id(1)   # phase: 0 = stats, 1 = write
    j = pl.program_id(2)   # vocab tile
    i = pl.program_id(3)   # row tile (innermost -> W block stays resident)

    tm = x_ref.shape[0]
    r0 = pl.multiple_of(i * tm, 8)          # row offset into full-N stats scratch

    # bf16 x bf16 -> f32 accumulation on the MXU; bias + softmax math in f32
    # (v5e VPU/EUP have no bf16).
    logits = jnp.dot(x_ref[...], w_ref[...], preferred_element_type=jnp.float32)
    logits = logits + b_ref[...]            # (tm, tv) f32
    nlc = logits.shape[-1] // 128           # 128-lane chunks of this vocab tile

    @pl.when(p == 0)
    def _stats():
        @pl.when(j == 0)
        def _init():
            m_ref[pl.ds(r0, tm), :] = jnp.full((tm, 128), -jnp.inf, jnp.float32)
            l_ref[pl.ds(r0, tm), :] = jnp.zeros((tm, 128), jnp.float32)

        # Lane-blocked running stats: VPU-only max/add per 128-lane chunk,
        # no per-step cross-lane XLU reduce and no 1-lane masked stores.
        m_prev = m_ref[pl.ds(r0, tm), :]
        m_new = m_prev
        for c in range(nlc):
            m_new = jnp.maximum(m_new, logits[:, c * 128:(c + 1) * 128])
        l_new = l_ref[pl.ds(r0, tm), :] * jnp.exp(m_prev - m_new)
        for c in range(nlc):
            l_new = l_new + jnp.exp(logits[:, c * 128:(c + 1) * 128] - m_new)
        m_ref[pl.ds(r0, tm), :] = m_new
        l_ref[pl.ds(r0, tm), :] = l_new

    @pl.when(p == 1)
    def _write():
        @pl.when(j == 0)
        def _finalize():
            # Collapse the 128 stat lanes once per row tile (one XLU reduce);
            # cache lse so jnp.log runs once per row tile, not per vocab tile.
            m_blk = m_ref[pl.ds(r0, tm), :]
            l_blk = l_ref[pl.ds(r0, tm), :]
            m_row = jnp.max(m_blk, axis=-1, keepdims=True)
            l_row = jnp.sum(l_blk * jnp.exp(m_blk - m_row), axis=-1, keepdims=True)
            lse_ref[pl.ds(r0, tm), :] = m_row + jnp.log(l_row)

        lse = lse_ref[pl.ds(r0, tm), :]     # (tm, 1)
        o_ref[...] = (logits - lse).astype(o_ref.dtype)


def prepare_logsoftmax_head(w, b, *, vocab_tile=None):
    """Pad + cast the (hidden, vocab) projection ONCE, outside the forward path.

    Padded vocab columns get W = 0 and bias = -1e9, so exp(logit - m) underflows
    to exactly 0 in the normalizer; they are also sliced off the output.
    """
    if vocab_tile is None:
        vocab_tile = _device_info()["vocab_tile"]
    vocab_tile = _round_up(vocab_tile, 128)
    h, v = w.shape
    tv = min(vocab_tile, _round_up(v, 128))
    v_pad = _round_up(v, tv)
    assert tv % 128 == 0 and v_pad - v < tv and v >= 1
    w_bf = jnp.pad(w, ((0, 0), (0, v_pad - v))).astype(jnp.bfloat16)
    b_f32 = jnp.pad(b.astype(jnp.float32), (0, v_pad - v),
                    constant_values=-1e9).reshape(1, v_pad)
    return dict(w=w_bf, b=b_f32, v=v, tv=tv)


def linear_logsoftmax(x2d, head, *, row_tile=None, row_splits=None,
                      out_dtype=jnp.float32):
    """x2d: [N, H] f32, head: prepared weights  ->  [N, V] log-probabilities."""
    n, h = x2d.shape
    w_bf, b_f32 = head["w"], head["b"]
    v, tv = head["v"], head["tv"]
    h_w, v_pad = w_bf.shape
    assert h == h_w
    nv = v_pad // tv

    info = _device_info()
    if row_tile is None:
        row_tile = info["row_tile"]
    if row_splits is None:
        row_splits = info["row_splits"]

    tm = min(_round_up(row_tile, 8), _round_up(n, 8))
    nm = -(-n // tm)
    ncs = max(1, min(row_splits, nm))        # megacore row split (v7x only)
    nm_per = -(-nm // ncs)
    n_pad = ncs * nm_per * tm

    # Row padding with zeros (padded rows are sliced off). x is small vs W/out.
    x_bf = jnp.pad(x2d, ((0, n_pad - n), (0, 0))).astype(jnp.bfloat16)

    out_itemsize = jnp.dtype(out_dtype).itemsize
    cost = pl.CostEstimate(
        flops=2 * 2 * n_pad * h * v_pad,                       # two matmul passes
        transcendentals=n_pad * v_pad + 2 * n_pad * 128 * nv,  # phase-0 exp + rescales
        bytes_accessed=(2 * nv * n_pad * h * 2                 # x, re-read per (phase, vocab tile)
                        + 2 * ncs * h * v_pad * 2              # W, streamed ~2x total
                        + n_pad * v_pad * out_itemsize),       # output, written once
    )

    # NOTE: stats scratch holds all n_pad rows (n_pad * 128 * 4 B per array per
    # core); at BERT scale (N <= ~16k rows) this is a few MiB of VMEM.
    out = pl.pallas_call(
        _linear_logsoftmax_kernel,
        out_shape=jax.ShapeDtypeStruct((n_pad, v_pad), out_dtype),
        grid_spec=pltpu.PrefetchScalarGridSpec(
            num_scalar_prefetch=0,
            grid=(ncs, 2, nv, nm_per),
            in_specs=[
                pl.BlockSpec((tm, h), lambda c, p, j, i: (c * nm_per + i, 0)),  # x rows
                pl.BlockSpec((h, tv), lambda c, p, j, i: (0, j)),               # W vocab tile
                pl.BlockSpec((1, tv), lambda c, p, j, i: (0, j)),               # bias tile
            ],
            # Phase 0 parks the (never written) output buffer on the FIRST block
            # this core writes in phase 1, i.e. (c*nm_per, 0); phase 1 then writes
            # every (row, vocab) block exactly once before its index changes.
            # This relies on Pallas' writeback-on-block-index-change semantics:
            # do NOT reorder grid axes or mark axes 1-3 as parallel.
            out_specs=pl.BlockSpec(
                (tm, tv), lambda c, p, j, i: (c * nm_per + p * i, p * j)),
            scratch_shapes=[
                pltpu.VMEM((nm_per * tm, 128), jnp.float32),   # running max (lane-blocked)
                pltpu.VMEM((nm_per * tm, 128), jnp.float32),   # running sum (lane-blocked)
                pltpu.VMEM((nm_per * tm, 1), jnp.float32),     # cached lse per row
            ],
        ),
        compiler_params=pltpu.CompilerParams(
            dimension_semantics=("parallel", "arbitrary", "arbitrary", "arbitrary"),
            vmem_limit_bytes=info["vmem_limit"]),
        cost_estimate=cost,
    )(x_bf, w_bf, b_f32)

    return out[:n, :v]


# ----------------------------------------------------------------------------
# Minimal BERT encoder (plain JAX glue, eval mode -> dropout is identity).
# TODO(synk): the BERT class body was not provided with the module; this is a
# faithful re-implementation of codertimo/BERT-pytorch's encoder semantics.
# ----------------------------------------------------------------------------
def _sinusoidal_pos_emb(max_len, d_model):
    pos = jnp.arange(max_len, dtype=jnp.float32)[:, None]
    div = jnp.exp(jnp.arange(0, d_model, 2, dtype=jnp.float32)
                  * -(math.log(10000.0) / d_model))
    pe = jnp.zeros((max_len, d_model), jnp.float32)
    pe = pe.at[:, 0::2].set(jnp.sin(pos * div))
    pe = pe.at[:, 1::2].set(jnp.cos(pos * div))
    return pe


def _layer_norm(x, gamma, beta, eps=1e-6):
    # Unbiased std and eps added to std -- faithful to codertimo/BERT-pytorch's
    # custom LayerNorm (intentionally NOT nn.LayerNorm semantics).
    mean = jnp.mean(x, axis=-1, keepdims=True)
    std = jnp.std(x, axis=-1, keepdims=True, ddof=1)
    return gamma * (x - mean) / (std + eps) + beta


def _gelu(x):
    return 0.5 * x * (1.0 + jnp.tanh(math.sqrt(2.0 / math.pi)
                                     * (x + 0.044715 * x ** 3)))


def _mha(x, mask, p, n_heads):
    b, s, h = x.shape
    d_k = h // n_heads

    def proj(w, bias):
        y = x @ w + bias
        return y.reshape(b, s, n_heads, d_k).transpose(0, 2, 1, 3)  # [B, nh, S, dk]

    q = proj(p["wq"], p["bq"])
    k = proj(p["wk"], p["bk"])
    v = proj(p["wv"], p["bv"])
    scores = jnp.einsum("bhqd,bhkd->bhqk", q, k) / math.sqrt(d_k)
    scores = jnp.where(mask, scores, -1e9)
    attn = jax.nn.softmax(scores, axis=-1)
    out = jnp.einsum("bhqk,bhkd->bhqd", attn, v)
    out = out.transpose(0, 2, 1, 3).reshape(b, s, h)
    return out @ p["wo"] + p["bo"]


def _ffn(x, p):
    return _gelu(x @ p["w1"] + p["b1"]) @ p["w2"] + p["b2"]


def bert_encoder(params, tokens, segment_label, n_heads):
    emb = (params["tok_emb"][tokens]
           + params["pos_emb"][: tokens.shape[1]][None, :, :]
           + params["seg_emb"][segment_label])
    mask = (tokens > 0)[:, None, None, :]  # [B, 1, 1, S]
    x = emb
    for lp in params["layers"]:
        a = _mha(_layer_norm(x, lp["ln1_g"], lp["ln1_b"]), mask, lp, n_heads)
        x = x + a
        f = _ffn(_layer_norm(x, lp["ln2_g"], lp["ln2_b"]), lp)
        x = x + f
    return x


# ----------------------------------------------------------------------------
# BERTLM forward:  (next_sentence_logprobs, mask_lm_logprobs)
# ----------------------------------------------------------------------------
def bertlm_forward(params, tokens, segment_label, n_heads):
    x = bert_encoder(params, tokens, segment_label, n_heads)      # [B, S, H]
    b, s, h = x.shape

    # NextSentencePrediction: a (B, 2) problem -> plain jnp (a Pallas launch
    # would be pure padding/launch overhead, per perf review).
    nsp = jax.nn.log_softmax(x[:, 0, :] @ params["nsp_w"] + params["nsp_b"],
                             axis=-1)

    # MaskLanguageModel: fused Pallas linear + online log-softmax over vocab.
    mlm = linear_logsoftmax(x.reshape(b * s, h), params["mlm_head"])
    return nsp, mlm.reshape(b, s, -1)


# ----------------------------------------------------------------------------
# Deterministic parameter construction
# ----------------------------------------------------------------------------
def init_params(key, vocab_size, hidden, n_layers, ff_hidden, max_len):
    keys = iter(jax.random.split(key, 64))

    def dense(k, fan_in, fan_out):
        return jax.random.normal(k, (fan_in, fan_out), jnp.float32) * 0.02

    tok_emb = jax.random.normal(next(keys), (vocab_size, hidden), jnp.float32) * 0.02
    tok_emb = tok_emb.at[0].set(0.0)            # padding_idx=0
    seg_emb = jax.random.normal(next(keys), (3, hidden), jnp.float32) * 0.02
    seg_emb = seg_emb.at[0].set(0.0)            # padding_idx=0

    layers = []
    for _ in range(n_layers):
        layers.append(dict(
            wq=dense(next(keys), hidden, hidden), bq=jnp.zeros((hidden,), jnp.float32),
            wk=dense(next(keys), hidden, hidden), bk=jnp.zeros((hidden,), jnp.float32),
            wv=dense(next(keys), hidden, hidden), bv=jnp.zeros((hidden,), jnp.float32),
            wo=dense(next(keys), hidden, hidden), bo=jnp.zeros((hidden,), jnp.float32),
            w1=dense(next(keys), hidden, ff_hidden), b1=jnp.zeros((ff_hidden,), jnp.float32),
            w2=dense(next(keys), ff_hidden, hidden), b2=jnp.zeros((hidden,), jnp.float32),
            ln1_g=jnp.ones((hidden,), jnp.float32), ln1_b=jnp.zeros((hidden,), jnp.float32),
            ln2_g=jnp.ones((hidden,), jnp.float32), ln2_b=jnp.zeros((hidden,), jnp.float32),
        ))

    mlm_w = dense(next(keys), hidden, vocab_size)
    mlm_b = jnp.zeros((vocab_size,), jnp.float32)

    return dict(
        tok_emb=tok_emb,
        seg_emb=seg_emb,
        pos_emb=_sinusoidal_pos_emb(max_len, hidden),
        layers=layers,
        nsp_w=dense(next(keys), hidden, 2),
        nsp_b=jnp.zeros((2,), jnp.float32),
        mlm_w=mlm_w,                 # raw f32 kept only for the reference check
        mlm_b=mlm_b,
        # padded + bf16-cast ONCE, outside the forward path (perf review):
        mlm_head=prepare_logsoftmax_head(mlm_w, mlm_b),
    )


if __name__ == "__main__":
    B, S, H, V = 2, 8, 32, 128
    N_LAYERS, N_HEADS, FF = 2, 4, 4 * 32

    key = jax.random.PRNGKey(0)
    k_par, k_tok, k_seg = jax.random.split(key, 3)

    params = init_params(k_par, V, H, N_LAYERS, FF, max_len=64)
    tokens = jax.random.randint(k_tok, (B, S), 1, V, dtype=jnp.int32)         # [B, S]
    segment_label = jax.random.randint(k_seg, (B, S), 1, 3, dtype=jnp.int32)  # [B, S]

    nsp, mlm = bertlm_forward(params, tokens, segment_label, N_HEADS)
    jax.block_until_ready((nsp, mlm))

    assert nsp.shape == (B, 2)
    assert mlm.shape == (B, S, V)
    # log-softmax rows must sum to ~1 in probability space
    assert bool(jnp.allclose(jnp.exp(nsp).sum(-1), 1.0, atol=1e-3))
    assert bool(jnp.allclose(jnp.exp(mlm).sum(-1), 1.0, atol=1e-3))
    # cross-check the MLM head against a plain-JAX reference
    # (bf16 MXU inputs -> log-prob accuracy is bf16-matmul limited; atol covers it)
    x_ref = bert_encoder(params, tokens, segment_label, N_HEADS)
    mlm_ref = jax.nn.log_softmax(x_ref.reshape(B * S, H) @ params["mlm_w"]
                                 + params["mlm_b"], axis=-1).reshape(B, S, V)
    assert bool(jnp.allclose(mlm, mlm_ref, atol=5e-2))

    print("KERNEL_OK")
</pallas_src>

<mosaic_0001>
module attributes {stable_mosaic.version = 11 : i64} {
  func.func @_linear_logsoftmax_kernel(%arg0: i32, %arg1: i32, %arg2: i32, %arg3: i32, %arg4: memref<16x32xbf16, #tpu.memory_space<vmem>>, %arg5: memref<32x128xbf16, #tpu.memory_space<vmem>>, %arg6: memref<1x128xf32, #tpu.memory_space<vmem>>, %arg7: memref<16x128xf32, #tpu.memory_space<vmem>>, %arg8: memref<16x128xf32, #tpu.memory_space<vmem>>, %arg9: memref<16x128xf32, #tpu.memory_space<vmem>>, %arg10: memref<16x1xf32, #tpu.memory_space<vmem>>) attributes {dimension_semantics = [#tpu.dimension_semantics<parallel>, #tpu.dimension_semantics<arbitrary>, #tpu.dimension_semantics<arbitrary>, #tpu.dimension_semantics<arbitrary>], iteration_bounds = array<i64: 1, 2, 1, 1>, scalar_prefetch = 0 : i64, scratch_operands = 3 : i64, tpu.core_type = #tpu.core_type<tc>, window_params = [{transform_indices = @transform_0, window_bounds = array<i64: 16, 32>}, {transform_indices = @transform_1, window_bounds = array<i64: 32, 128>}, {transform_indices = @transform_2, window_bounds = array<i64: 1, 128>}, {transform_indices = @transform_3, window_bounds = array<i64: 16, 128>}]} {
    %c16_i32 = arith.constant 16 : i32
    %0 = arith.muli %arg3, %c16_i32 : i32
    %1 = tpu.assume_multiple %0, 8 : i32
    %c0 = arith.constant 0 : index
    %c0_0 = arith.constant 0 : index
    %2 = vector.load %arg4[%c0, %c0_0] : memref<16x32xbf16, #tpu.memory_space<vmem>>, vector<16x32xbf16>
    %c0_1 = arith.constant 0 : index
    %c0_2 = arith.constant 0 : index
    %3 = vector.load %arg5[%c0_1, %c0_2] : memref<32x128xbf16, #tpu.memory_space<vmem>>, vector<32x128xbf16>
    %cst = arith.constant dense<0.000000e+00> : vector<16x128xf32>
    %4 = tpu.matmul %2, %3, %cst {dimension_numbers = #tpu.dot_dimension_numbers<[1], [0], [0], [1], [0, 0, 1, 1], [], []>} : vector<16x32xbf16>, vector<32x128xbf16>, vector<16x128xf32> -> vector<16x128xf32>
    %c0_3 = arith.constant 0 : index
    %c0_4 = arith.constant 0 : index
    %5 = vector.load %arg6[%c0_3, %c0_4] : memref<1x128xf32, #tpu.memory_space<vmem>>, vector<1x128xf32>
    %6 = vector.broadcast %5 : vector<1x128xf32> to vector<16x128xf32>
    %7 = arith.addf %4, %6 : vector<16x128xf32>
    %c0_i32 = arith.constant 0 : i32
    %8 = arith.cmpi eq, %arg1, %c0_i32 : i32
    %9 = arith.extui %8 : i1 to i32
    %c0_i32_5 = arith.constant 0 : i32
    %10 = arith.cmpi ne, %9, %c0_i32_5 : i32
    scf.if %10 {
      %c0_i32_7 = arith.constant 0 : i32
      %14 = arith.cmpi eq, %arg2, %c0_i32_7 : i32
      %15 = arith.extui %14 : i1 to i32
      %c0_i32_8 = arith.constant 0 : i32
      %16 = arith.cmpi ne, %15, %c0_i32_8 : i32
      scf.if %16 {
        %cst_13 = arith.constant 0xFF800000 : f32
        %32 = vector.broadcast %cst_13 : f32 to vector<16x128xf32>
        %33 = arith.index_cast %1 : i32 to index
        %c0_14 = arith.constant 0 : index
        %34 = vector.load %arg8[%33, %c0_14] : memref<16x128xf32, #tpu.memory_space<vmem>>, vector<16x128xf32>
        tpu.vector_store %arg8[%33, %c0_14], %32 {strides = array<i32>} : memref<16x128xf32, #tpu.memory_space<vmem>>, vector<16x128xf32>,
        %cst_15 = arith.constant 0.000000e+00 : f32
        %35 = vector.broadcast %cst_15 : f32 to vector<16x128xf32>
        %36 = arith.index_cast %1 : i32 to index
        %c0_16 = arith.constant 0 : index
        %37 = vector.load %arg9[%36, %c0_16] : memref<16x128xf32, #tpu.memory_space<vmem>>, vector<16x128xf32>
        tpu.vector_store %arg9[%36, %c0_16], %35 {strides = array<i32>} : memref<16x128xf32, #tpu.memory_space<vmem>>, vector<16x128xf32>,
      } else {
      }
      %17 = arith.index_cast %1 : i32 to index
      %c0_9 = arith.constant 0 : index
      %18 = vector.load %arg8[%17, %c0_9] : memref<16x128xf32, #tpu.memory_space<vmem>>, vector<16x128xf32>
      %19 = arith.maximumf %18, %7 : vector<16x128xf32>
      %20 = arith.index_cast %1 : i32 to index
      %c0_10 = arith.constant 0 : index
      %21 = vector.load %arg9[%20, %c0_10] : memref<16x128xf32, #tpu.memory_space<vmem>>, vector<16x128xf32>
      %22 = arith.subf %18, %19 : vector<16x128xf32>
      %23 = math.exp %22 : vector<16x128xf32>
      %24 = arith.mulf %21, %23 : vector<16x128xf32>
      %25 = arith.subf %7, %19 : vector<16x128xf32>
      %26 = math.exp %25 : vector<16x128xf32>
      %27 = arith.addf %24, %26 : vector<16x128xf32>
      %28 = arith.index_cast %1 : i32 to index
      %c0_11 = arith.constant 0 : index
      %29 = vector.load %arg8[%28, %c0_11] : memref<16x128xf32, #tpu.memory_space<vmem>>, vector<16x128xf32>
      tpu.vector_store %arg8[%28, %c0_11], %19 {strides = array<i32>} : memref<16x128xf32, #tpu.memory_space<vmem>>, vector<16x128xf32>,
      %30 = arith.index_cast %1 : i32 to index
      %c0_12 = arith.constant 0 : index
      %31 = vector.load %arg9[%30, %c0_12] : memref<16x128xf32, #tpu.memory_space<vmem>>, vector<16x128xf32>
      tpu.vector_store %arg9[%30, %c0_12], %27 {strides = array<i32>} : memref<16x128xf32, #tpu.memory_space<vmem>>, vector<16x128xf32>,
    } else {
    }
    %c1_i32 = arith.constant 1 : i32
    %11 = arith.cmpi eq, %arg1, %c1_i32 : i32
    %12 = arith.extui %11 : i1 to i32
    %c0_i32_6 = arith.constant 0 : i32
    %13 = arith.cmpi ne, %12, %c0_i32_6 : i32
    scf.if %13 {
      %c0_i32_7 = arith.constant 0 : i32
      %14 = arith.cmpi eq, %arg2, %c0_i32_7 : i32
      %15 = arith.extui %14 : i1 to i32
      %c0_i32_8 = arith.constant 0 : i32
      %16 = arith.cmpi ne, %15, %c0_i32_8 : i32
      scf.if %16 {
        %22 = arith.index_cast %1 : i32 to index
        %c0_12 = arith.constant 0 : index
        %23 = vector.load %arg8[%22, %c0_12] : memref<16x128xf32, #tpu.memory_space<vmem>>, vector<16x128xf32>
        %24 = arith.index_cast %1 : i32 to index
        %c0_13 = arith.constant 0 : index
        %25 = vector.load %arg9[%24, %c0_13] : memref<16x128xf32, #tpu.memory_space<vmem>>, vector<16x128xf32>
        %cst_14 = arith.constant dense<0xFF800000> : vector<16xf32>
        %26 = vector.multi_reduction <maximumf>, %23, %cst_14 [1] : vector<16x128xf32> to vector<16xf32>
        %27 = vector.shape_cast %26 : vector<16xf32> to vector<16x1xf32>
        %28 = vector.broadcast %27 : vector<16x1xf32> to vector<16x128xf32>
        %29 = arith.subf %23, %28 : vector<16x128xf32>
        %30 = math.exp %29 : vector<16x128xf32>
        %31 = arith.mulf %25, %30 : vector<16x128xf32>
        %cst_15 = arith.constant dense<0.000000e+00> : vector<16xf32>
        %32 = vector.multi_reduction <add>, %31, %cst_15 [1] : vector<16x128xf32> to vector<16xf32>
        %33 = vector.shape_cast %32 : vector<16xf32> to vector<16x1xf32>
        %34 = math.log %33 : vector<16x1xf32>
        %35 = arith.addf %27, %34 : vector<16x1xf32>
        %36 = arith.index_cast %1 : i32 to index
        %c0_16 = arith.constant 0 : index
        %37 = vector.load %arg10[%36, %c0_16] : memref<16x1xf32, #tpu.memory_space<vmem>>, vector<16x1xf32>
        tpu.vector_store %arg10[%36, %c0_16], %35 {strides = array<i32>} : memref<16x1xf32, #tpu.memory_space<vmem>>, vector<16x1xf32>,
      } else {
      }
      %17 = arith.index_cast %1 : i32 to index
      %c0_9 = arith.constant 0 : index
      %18 = vector.load %arg10[%17, %c0_9] : memref<16x1xf32, #tpu.memory_space<vmem>>, vector<16x1xf32>
      %19 = vector.broadcast %18 : vector<16x1xf32> to vector<16x128xf32>
      %20 = arith.subf %7, %19 : vector<16x128xf32>
      %c0_10 = arith.constant 0 : index
      %c0_11 = arith.constant 0 : index
      %21 = vector.load %arg7[%c0_10, %c0_11] : memref<16x128xf32, #tpu.memory_space<vmem>>, vector<16x128xf32>
      tpu.vector_store %arg7[%c0_10, %c0_11], %20 {strides = array<i32>} : memref<16x128xf32, #tpu.memory_space<vmem>>, vector<16x128xf32>,
    } else {
    }
    return
  }
  func.func @transform_0(%arg0: i32, %arg1: i32, %arg2: i32, %arg3: i32) -> (i32, i32) {
    %c1_i32 = arith.constant 1 : i32
    %0 = arith.muli %arg0, %c1_i32 : i32
    %1 = arith.addi %0, %arg3 : i32
    %c0_i32 = arith.constant 0 : i32
    %c0_i32_0 = arith.constant 0 : i32
    return %1, %c0_i32 : i32, i32
  }
  func.func @transform_1(%arg0: i32, %arg1: i32, %arg2: i32, %arg3: i32) -> (i32, i32) {
    %c0_i32 = arith.constant 0 : i32
    %c0_i32_0 = arith.constant 0 : i32
    return %c0_i32, %arg2 : i32, i32
  }
  func.func @transform_2(%arg0: i32, %arg1: i32, %arg2: i32, %arg3: i32) -> (i32, i32) {
    %c0_i32 = arith.constant 0 : i32
    %c0_i32_0 = arith.constant 0 : i32
    return %c0_i32, %arg2 : i32, i32
  }
  func.func @transform_3(%arg0: i32, %arg1: i32, %arg2: i32, %arg3: i32) -> (i32, i32) {
    %c1_i32 = arith.constant 1 : i32
    %0 = arith.muli %arg0, %c1_i32 : i32
    %1 = arith.muli %arg1, %arg3 : i32
    %2 = arith.addi %0, %1 : i32
    %3 = arith.muli %arg1, %arg2 : i32
    %c0_i32 = arith.constant 0 : i32
    return %2, %3 : i32, i32
  }
}

</mosaic_0001>

<llo_original>
// kernel: tpu_custom_call.1
$region0: #{tpu_custom_call.1}
  #allocation0 [shape = 'u32[]', space=smem, size = 0x4, offset = 0x4, fixed_abs, tag = 'smem constant byte address 0x4 - core index']
  #allocation1 [shape = 'u32[144,128]{1,0:T(1,128)}', space=vmem, size = 0x12000, scoped, tag = 'internal scratch']
  #allocation2 [shape = 'f32[16,128]{1,0:T(8,128)}', space=vmem, size = 0x2000, scoped, tag = 'scratch operand']
  #allocation3 [shape = 'f32[16,128]{1,0:T(8,128)}', space=vmem, size = 0x2000, scoped, tag = 'scratch operand']
  #allocation4 [shape = 'f32[16,1]{1,0:T(8,128)}', space=vmem, size = 0x2000, scoped, tag = 'scratch operand']
  %s0 = inlined_call_operand.hbm [shape: bf16[16,32], index: 0, kind: input, shape index: {}]
  %s1 = inlined_call_operand.hbm [shape: bf16[32,128], index: 1, kind: input, shape index: {}]
  %s2 = inlined_call_operand.hbm [shape: f32[1,128], index: 2, kind: input, shape index: {}]
  %s3 = inlined_call_operand.hbm [shape: f32[16,128], index: 3, kind: output, shape index: {}]
  %s4 = sld [smem:[#allocation0]]
  $region73: #{tpu_custom_call.1} parent=0
    _
  %s6 = ssub.s32 1, %s4
  %s7 = scalar_select 0, %s6, %s4
  $region1: #{tpu_custom_call.1} parent=0
    #allocation5 [shape = 'u8[4096]{0}', space=vmem, size = 0x1000, scoped, tag = 'input window, operand 0, single buffered']
    #allocation6 [shape = 's32[2]{0}', space=sflag, size = 0x8, scoped, tag = 'scoped memory for tpu_custom_call.1']
    #allocation7 [shape = 's32[2]{0}', space=sflag, size = 0x8, scoped, tag = 'scoped memory for tpu_custom_call.1']
    #allocation8 [shape = 'u8[8192]{0}', space=vmem, size = 0x2000, scoped, tag = 'input window, operand 1, single buffered']
    #allocation9 [shape = 's32[1]{0}', space=sflag, size = 0x4, scoped, tag = 'scoped memory for tpu_custom_call.1']
    #allocation10 [shape = 'u8[512]{0}', space=vmem, size = 0x400, scoped, tag = 'input window, operand 2, single buffered']
    #allocation11 [shape = 'u8[16384]{0}', space=vmem, size = 0x4000, scoped, tag = 'output window, operand 0']
    %8 = vsyncpa [#allocation6], 0
    %9 = vsyncpa [#allocation9], 0
    %10 = vsyncpa [#allocation7], 0
    %s11 = scalar_lea.sflag [#allocation7], 1
    %12 = vsyncpa %s11, 0
    loop: start=0, step=1, limit=4
    $region2: #{tpu_custom_call.1} parent=1 // loop_pre_header
      _
    $region3: #{tpu_custom_call.1} parent=1 // loop_header
      %s14 = sphi 0, %s18
      %p15 = scmp.ge.s32.totalorder %s14, 4
      %s21 = sphi 0, %s47
      %s22 = sphi 0, %s43
      %s23 = sphi 0, %s39
      %s24 = sphi 0, %s35
      %s25 = sphi 0, %s21
      %s26 = sphi 0, %s22
      %s27 = sphi 0, %s23
      %s28 = sphi 0, %s24
      %s29 = sphi 0, %s25
      %s30 = sphi 0, %s26
      %s31 = sphi 0, %s27
      %s32 = sphi 0, %s28
      %s52 = sphi 0, %s54
      %s55 = sphi 0, %s52
      %s56 = sphi 0, %s55
      %s72 = sphi 0, %s56
      %s78 = sphi 0, %s80
      %s81 = sphi 0, %s78
      %s82 = sphi 0, %s81
      %s98 = sphi 0, %s82
      %s104 = sphi 0, %s106
      %s107 = sphi 0, %s104
      %s108 = sphi 0, %s107
      %s124 = sphi 0, %s108
      %s138 = sphi 0, %s140
      %s141 = sphi 0, %s138
      %s142 = sphi 0, %s141
      %s158 = sphi 0, %s142
    $region4: #{tpu_custom_call.1} parent=1 // loop_header_branch
      %17 = sbr.rel (%p15) target = $region8
    $region5: #{tpu_custom_call.1} parent=1 // loop_body
      %s19 = ssub.s32 %s14, 1
      %s20 = ssub.s32 %s14, 2
      %s33 = sadd.s32 1, %s24
      %p34 = scmp.ge.s32.totalorder %s33, 1
      %s35 = scalar_select %p34, 0, %s33
      %s36 = sadd.s32 1, %s23
      %s37 = scalar_select %p34, %s36, %s23
      %p38 = scmp.ge.s32.totalorder %s37, 1
      %s39 = scalar_select %p38, 0, %s37
      %s40 = sadd.s32 1, %s22
      %s41 = scalar_select %p38, %s40, %s22
      %p42 = scmp.ge.s32.totalorder %s41, 2
      %s43 = scalar_select %p42, 0, %s41
      %s44 = sadd.s32 1, %s21
      %s45 = scalar_select %p42, %s44, %s21
      %p46 = scmp.ge.s32.totalorder %s45, 1
      %s47 = scalar_select %p46, 0, %s45
      %s48 = sadd.s32 %s21, %s24
      %s49 = sadd.s32 %s47, %s35
      %s50 = ssub.s32 %s48, %s49
      %p51 = scmp.eq.s32.totalorder %s50, 0
      %s53 = sadd.s32 %s52, 1
      %s54 = scalar_select %p51, %s52, %s53
      %p57 = pneg %p51
      %p58 = scmp.eq.s32.totalorder %s14, 1
      %p59 = por %p57, %p58
      %p60 = scmp.ne.s32.totalorder %s52, %s55
      %p61 = scmp.eq.s32.totalorder %s14, 0
      %p62 = por %p60, %p61
      %p63 = scmp.ne.s32.totalorder %s52, %s55
      %p64 = scmp.eq.s32.totalorder %s19, 1
      %p65 = por %p63, %p64
      %p66 = scmp.ne.s32.totalorder %s55, %s56
      %p67 = scmp.eq.s32.totalorder %s19, 0
      %p68 = por %p66, %p67
      %p69 = scmp.ne.s32.totalorder %s55, %s56
      %p70 = scmp.eq.s32.totalorder %s20, 1
      %p71 = por %p69, %p70
      %p73 = scmp.ne.s32.totalorder %s56, %s72
      %p74 = scmp.eq.s32.totalorder %s20, 0
      %p75 = por %p73, %p74
      %s76 = ssub.s32 %s23, %s39
      %p77 = scmp.eq.s32.totalorder %s76, 0
      %s79 = sadd.s32 %s78, 1
      %s80 = scalar_select %p77, %s78, %s79
      %p83 = pneg %p77
      %p84 = scmp.eq.s32.totalorder %s14, 1
      %p85 = por %p83, %p84
      %p86 = scmp.ne.s32.totalorder %s78, %s81
      %p87 = scmp.eq.s32.totalorder %s14, 0
      %p88 = por %p86, %p87
      %p89 = scmp.ne.s32.totalorder %s78, %s81
      %p90 = scmp.eq.s32.totalorder %s19, 1
      %p91 = por %p89, %p90
      %p92 = scmp.ne.s32.totalorder %s81, %s82
      %p93 = scmp.eq.s32.totalorder %s19, 0
      %p94 = por %p92, %p93
      %p95 = scmp.ne.s32.totalorder %s81, %s82
      %p96 = scmp.eq.s32.totalorder %s20, 1
      %p97 = por %p95, %p96
      %p99 = scmp.ne.s32.totalorder %s82, %s98
      %p100 = scmp.eq.s32.totalorder %s20, 0
      %p101 = por %p99, %p100
      %s102 = ssub.s32 %s23, %s39
      %p103 = scmp.eq.s32.totalorder %s102, 0
      %s105 = sadd.s32 %s104, 1
      %s106 = scalar_select %p103, %s104, %s105
      %p109 = pneg %p103
      %p110 = scmp.eq.s32.totalorder %s14, 1
      %p111 = por %p109, %p110
      %p112 = scmp.ne.s32.totalorder %s104, %s107
      %p113 = scmp.eq.s32.totalorder %s14, 0
      %p114 = por %p112, %p113
      %p115 = scmp.ne.s32.totalorder %s104, %s107
      %p116 = scmp.eq.s32.totalorder %s19, 1
      %p117 = por %p115, %p116
      %p118 = scmp.ne.s32.totalorder %s107, %s108
      %p119 = scmp.eq.s32.totalorder %s19, 0
      %p120 = por %p118, %p119
      %p121 = scmp.ne.s32.totalorder %s107, %s108
      %p122 = scmp.eq.s32.totalorder %s20, 1
      %p123 = por %p121, %p122
      %p125 = scmp.ne.s32.totalorder %s108, %s124
      %p126 = scmp.eq.s32.totalorder %s20, 0
      %p127 = por %p125, %p126
      %s128 = smul.u32 %s22, %s24
      %s129 = sadd.s32 %s21, %s128
      %s130 = smul.u32 %s22, %s23
      %s131 = smul.u32 %s43, %s35
      %s132 = sadd.s32 %s47, %s131
      %s133 = smul.u32 %s43, %s39
      %s134 = ssub.s32 %s129, %s132
      %s135 = ssub.s32 %s130, %s133
      %s136 = sor.u32 %s134, %s135
      %p137 = scmp.eq.s32.totalorder %s136, 0
      %s139 = sadd.s32 %s138, 1
      %s140 = scalar_select %p137, %s138, %s139
      %p143 = pneg %p137
      %p144 = scmp.eq.s32.totalorder %s14, 1
      %p145 = por %p143, %p144
      %p146 = scmp.ne.s32.totalorder %s138, %s141
      %p147 = scmp.eq.s32.totalorder %s14, 0
      %p148 = por %p146, %p147
      %p149 = scmp.ne.s32.totalorder %s138, %s141
      %p150 = scmp.eq.s32.totalorder %s19, 1
      %p151 = por %p149, %p150
      %p152 = scmp.ne.s32.totalorder %s141, %s142
      %p153 = scmp.eq.s32.totalorder %s19, 0
      %p154 = por %p152, %p153
      %p155 = scmp.ne.s32.totalorder %s141, %s142
      %p156 = scmp.eq.s32.totalorder %s20, 1
      %p157 = por %p155, %p156
      %p159 = scmp.ne.s32.totalorder %s142, %s158
      %p160 = scmp.eq.s32.totalorder %s20, 0
      %p161 = por %p159, %p160
      %p162 = scmp.le.s32.totalorder 1, %s14
      %p163 = scmp.lt.s32.totalorder %s14, 3
      %p164 = pnand %p162, %p163
      %p165 = pneg %p164
      // Predicated region
      $region9: #{tpu_custom_call.1} parent=5 // pred_check
        _
      $region10: #{tpu_custom_call.1} parent=5 // pred_check_branch
        %167 = sbr.rel (%p164) target = $region12
      $region11: #{tpu_custom_call.1} parent=5 // pred_region
        %s168 = ssub.s32 %s14, 1
        // Predicated region
        $region13: #{tpu_custom_call.1} parent=11 // pred_check
          %p169 = pneg %p68
        $region14: #{tpu_custom_call.1} parent=11 // pred_check_branch
          %171 = sbr.rel (%p169) target = $region16
        $region15: #{tpu_custom_call.1} parent=11 // pred_region
          %s172 = sadd.s32 %s25, %s28
          %s173 = smul.u32 2, %s172
          %s175 = ssub.s32 128, 128
          %176 = vsyncadd [#allocation6], %s175
          %s177 = smul.addr %s173, 64
          %s178 = scalar_lea.hbm %s0, %s177
          %s179 = sshll.u32 [#allocation5], 4
          %s180 = int_to_ptr.vmem [resolvable:$true] %s179
          %185 = dma.hbm_to_vmem [thread:$0]  %s178, 128, %s180, [#allocation6], 64, 64, 4
        $region16: #{tpu_custom_call.1} parent=11 // pred_fallthru
          _
        // Predicated region
        $region17: #{tpu_custom_call.1} parent=11 // pred_check
          %p186 = pneg %p94
        $region18: #{tpu_custom_call.1} parent=11 // pred_check_branch
          %188 = sbr.rel (%p186) target = $region20
        $region19: #{tpu_custom_call.1} parent=11 // pred_region
          %s190 = ssub.s32 256, 256
          %191 = vsyncadd [#allocation9], %s190
          %s192 = smul.addr %s27, 64
          %s193 = scalar_lea.hbm %s1, %s192
          %s194 = sshll.u32 [#allocation8], 4
          %s195 = int_to_ptr.vmem [resolvable:$true] %s194
          %200 = dma.hbm_to_vmem [thread:$0]  %s193, 256, %s195, [#allocation9], 64, 64, 4
        $region20: #{tpu_custom_call.1} parent=11 // pred_fallthru
          _
        // Predicated region
        $region21: #{tpu_custom_call.1} parent=11 // pred_check
          %p201 = pneg %p120
        $region22: #{tpu_custom_call.1} parent=11 // pred_check_branch
          %203 = sbr.rel (%p201) target = $region24
        $region23: #{tpu_custom_call.1} parent=11 // pred_region
          %s205 = ssub.s32 16, 16
          %206 = vsyncadd [#allocation9], %s205
          %s207 = smul.addr %s27, 16
          %s208 = scalar_lea.hbm %s2, %s207
          %s210 = sshll.u32 [#allocation10], 4
          %s211 = int_to_ptr.vmem [resolvable:$true] %s210
          %213 = dma.hbm_to_vmem [thread:$0]  %s208, 16, %s211, [#allocation9]
        $region24: #{tpu_custom_call.1} parent=11 // pred_fallthru
          _
      $region12: #{tpu_custom_call.1} parent=5 // pred_fallthru
        _
      %p214 = scmp.lt.s32.totalorder %s14, 2
      // Predicated region
      $region25: #{tpu_custom_call.1} parent=5 // pred_check
        %p215 = pneg %p214
      $region26: #{tpu_custom_call.1} parent=5 // pred_check_branch
        %217 = sbr.rel (%p215) target = $region28
      $region27: #{tpu_custom_call.1} parent=5 // pred_region
        _
      $region28: #{tpu_custom_call.1} parent=5 // pred_fallthru
        _
      %p218 = scmp.le.s32.totalorder 1, %s14
      %p219 = scmp.lt.s32.totalorder %s14, 3
      %p220 = pnand %p218, %p219
      %p221 = pneg %p220
      // Predicated region
      $region29: #{tpu_custom_call.1} parent=5 // pred_check
        _
      $region30: #{tpu_custom_call.1} parent=5 // pred_check_branch
        %223 = sbr.rel (%p220) target = $region32
      $region31: #{tpu_custom_call.1} parent=5 // pred_region
        %s224 = ssub.s32 %s14, 1
        // Predicated region
        $region33: #{tpu_custom_call.1} parent=31 // pred_check
          %p225 = pneg %p68
        $region34: #{tpu_custom_call.1} parent=31 // pred_check_branch
          %227 = sbr.rel (%p225) target = $region36
        $region35: #{tpu_custom_call.1} parent=31 // pred_region
          %228 = dma.done [#allocation6], 128
        $region36: #{tpu_custom_call.1} parent=31 // pred_fallthru
          _
        // Predicated region
        $region37: #{tpu_custom_call.1} parent=31 // pred_check
          %p229 = pneg %p94
        $region38: #{tpu_custom_call.1} parent=31 // pred_check_branch
          %231 = sbr.rel (%p229) target = $region40
        $region39: #{tpu_custom_call.1} parent=31 // pred_region
          %232 = dma.done [#allocation9], 256
        $region40: #{tpu_custom_call.1} parent=31 // pred_fallthru
          _
        // Predicated region
        $region41: #{tpu_custom_call.1} parent=31 // pred_check
          %p233 = pneg %p120
        $region42: #{tpu_custom_call.1} parent=31 // pred_check_branch
          %235 = sbr.rel (%p233) target = $region44
        $region43: #{tpu_custom_call.1} parent=31 // pred_region
          %236 = dma.done [#allocation9], 16
        $region44: #{tpu_custom_call.1} parent=31 // pred_fallthru
          _
        %p237 = pneg %p68
        %p238 = pneg %p65
        %p239 = pneg %p94
        %p240 = pneg %p91
        %p241 = pneg %p120
        %p242 = pneg %p117
        %p243 = pneg %p154
        %p244 = pneg %p151
        %s245 = sand.u32 %s141, 1
        %s246 = scalar_lea.sflag [#allocation7], %s245
        %s247 = sand.u32 %s141, 1
        %s248 = smul.addr %s247, 16
        %s249 = scalar_lea.vmem [#allocation11], %s248
        %s250 = sadd.s32 %s25, %s28
        %s251 = smul.u32 2, %s250
        %s252 = smul.u32 %s26, %s28
        %s253 = sadd.s32 %s25, %s252
        %s254 = smul.u32 %s26, %s27
        %s255 = smul.u32 2, %s253
        %s257 = smul.u32 %s28, 16
        %v258 = vld [vmem:[#allocation5] sm:$0xf]
        %v259 = vld [vmem:[#allocation5 + $0x4] sm:$0xf]
        %v260 = vld [vmem:[#allocation8] sm:$0xf]
        %v261 = vld [vmem:[#allocation8 + $0x4] sm:$0xf]
        %v262 = vld [vmem:[#allocation8 + $0x8] sm:$0xf]
        %v263 = vld [vmem:[#allocation8 + $0xc] sm:$0xf]
        %v264 = vld [vmem:[#allocation10] sm:$0x1]
        %v266 = vlaneseq
        %v267 = vshrl.u32 %v266, 7
        %v268 = vsub.s32 0, %v267
        %v269 = vrot.slane %v264, %v268
        %v273 = vunpack.c.l.b16 %v258
        %v274 = vunpack.c.l.b16 %v259
        %v275 = vpack.c.b16 %v274, %v273
        %v280 = vunpack.c.l.b16 %v260
        %v281 = vunpack.c.l.b16 %v261
        %v282 = vunpack.c.l.b16 %v262
        %v283 = vunpack.c.l.b16 %v263
        %v284 = vpack.c.b16 %v281, %v280
        %v285 = vpack.c.b16 %v283, %v282
        %vm288 = vcmask 261120
        %v290 = vsel %vm288, %v275, 0
        %292 = vmatprep.subr.bf16.mxu0 0
        %293 = vmatpush1.bf16.msra.mxu0 %v284
        %294 = vmatprep.subr.bf16.mxu0 0
        %295 = vmatpush1.bf16.msra.mxu0 %v285
        %296 = vmatprep.subr.bf16.mxu0 0
        %297 = vmatpush1.bf16.msra.mxu0 0
        %298 = vmatprep.subr.bf16.mxu0 0
        %299 = vmatpush1.bf16.msra.mxu0 0
        %300 = vmatprep.subr.bf16.mxu0 0
        %301 = vmatpush1.bf16.msra.mxu0 0
        %302 = vmatprep.subr.bf16.mxu0 0
        %303 = vmatpush1.bf16.msra.mxu0 0
        %304 = vmatprep.subr.bf16.mxu0 0
        %305 = vmatpush1.bf16.msra.mxu0 0
        %306 = vmatprep.subr.bf16.mxu0 0
        %307 = vmatpush1.bf16.msra.mxu0 0
        %308 = vmatprep.subr.bf16.mxu0 0
        %309 = vmatpush1.bf16.msra.mxu0 0
        %310 = vmatprep.subr.bf16.mxu0 0
        %311 = vmatpush1.bf16.msra.mxu0 0
        %312 = vmatprep.subr.bf16.mxu0 0
        %313 = vmatpush1.bf16.msra.mxu0 0
        %314 = vmatprep.subr.bf16.mxu0 0
        %315 = vmatpush1.bf16.msra.mxu0 0
        %316 = vmatprep.subr.bf16.mxu0 0
        %317 = vmatpush1.bf16.msra.mxu0 0
        %318 = vmatprep.subr.bf16.mxu0 0
        %319 = vmatpush1.bf16.msra.mxu0 0
        %320 = vmatprep.subr.bf16.mxu0 0
        %321 = vmatpush1.bf16.msra.mxu0 0
        %322 = vmatprep.subr.bf16.mxu0 0
        %323 = vmatpush1.bf16.msra.mxu0 0
        %324 = vmatprep.mubr.bf16.mxu0 0
        %325 = vmatmul.mubr.bf16.gmra.mrb[0].mxu0 %v290
        %v326 = vpop.f32.mrb[0].mxu0
        %v327 = vadd.f32 %v269, %v326
        %v328 = vpop.f32.mrb[0].mxu0
        %v329 = vpop.f32.mrb[0].mxu0
        %v330 = vadd.f32 %v269, %v329
        %v331 = vpop.f32.mrb[0].mxu0
        %332 = vdwg.mxu0
        %p333 = scmp.eq.s32.totalorder %s26, 0
        // Predicated region
        $region45: #{tpu_custom_call.1} parent=31 // pred_check
          %p334 = pneg %p333
        $region46: #{tpu_custom_call.1} parent=31 // pred_check_branch
          %336 = sbr.rel (%p334) target = $region48
        $region47: #{tpu_custom_call.1} parent=31 // pred_region
          %p337 = scmp.eq.s32.totalorder %s27, 0
          // Predicated region
          $region49: #{tpu_custom_call.1} parent=47 // pred_check
            %p338 = pneg %p337
          $region50: #{tpu_custom_call.1} parent=47 // pred_check_branch
            %340 = sbr.rel (%p338) target = $region52
          $region51: #{tpu_custom_call.1} parent=47 // pred_region
            %s341 = scalar_lea.vmem [#allocation2], %s257
            %342 = vst [vmem:[%s341] sm:$0xff] -inf
            %343 = vst [vmem:[%s341 + $0x8] sm:$0xff] -inf
            %s344 = scalar_lea.vmem [#allocation3], %s257
            %345 = vst [vmem:[%s344] sm:$0xff] 0.0
            %346 = vst [vmem:[%s344 + $0x8] sm:$0xff] 0.0
          $region52: #{tpu_custom_call.1} parent=47 // pred_fallthru
            _
          %s347 = scalar_lea.vmem [#allocation2], %s257
          %v348 = vld [vmem:[%s347] sm:$0xff]
          %v349 = vld [vmem:[%s347 + $0x8] sm:$0xff]
          %v350 = vmax.f32 %v348, %v327
          %v351 = vmax.f32 %v349, %v330
          %s352 = scalar_lea.vmem [#allocation3], %s257
          %v353 = vld [vmem:[%s352] sm:$0xff]
          %v354 = vld [vmem:[%s352 + $0x8] sm:$0xff]
          %v355 = vsub.f32 %v348, %v350
          %v356 = vsub.f32 %v349, %v351
          %v357 = vmul.f32 %v355, 1.442695
          %v358 = vpow.pop %v357
          %v359 = vmul.f32 %v356, 1.442695
          %v360 = vpow.pop %v359
          %v361 = vmul.f32 %v353, %v358
          %v362 = vmul.f32 %v354, %v360
          %v363 = vsub.f32 %v327, %v350
          %v364 = vsub.f32 %v330, %v351
          %v365 = vmul.f32 %v363, 1.442695
          %v366 = vpow.pop %v365
          %v367 = vmul.f32 %v364, 1.442695
          %v368 = vpow.pop %v367
          %v369 = vadd.f32 %v361, %v366
          %v370 = vadd.f32 %v362, %v368
          %371 = vst [vmem:[%s347] sm:$0xff] %v350
          %372 = vst [vmem:[%s347 + $0x8] sm:$0xff] %v351
          %373 = vst [vmem:[%s352] sm:$0xff] %v369
          %374 = vst [vmem:[%s352 + $0x8] sm:$0xff] %v370
        $region48: #{tpu_custom_call.1} parent=31 // pred_fallthru
          _
        %p375 = scmp.eq.s32.totalorder %s26, 1
        // Predicated region
        $region53: #{tpu_custom_call.1} parent=31 // pred_check
          %p376 = pneg %p375
        $region54: #{tpu_custom_call.1} parent=31 // pred_check_branch
          %378 = sbr.rel (%p376) target = $region56
        $region55: #{tpu_custom_call.1} parent=31 // pred_region
          %p379 = scmp.eq.s32.totalorder %s27, 0
          // Predicated region
          $region57: #{tpu_custom_call.1} parent=55 // pred_check
            %p380 = pneg %p379
          $region58: #{tpu_custom_call.1} parent=55 // pred_check_branch
            %382 = sbr.rel (%p380) target = $region60
          $region59: #{tpu_custom_call.1} parent=55 // pred_region
            %s383 = scalar_lea.vmem [#allocation2], %s257
            %v384 = vld [vmem:[%s383] sm:$0xff]
            %v385 = vld [vmem:[%s383 + $0x8] sm:$0xff]
            %s386 = scalar_lea.vmem [#allocation3], %s257
            %v387 = vld [vmem:[%s386] sm:$0xff]
            %v388 = vld [vmem:[%s386 + $0x8] sm:$0xff]
            %389 = vmax.xlane.f32.xlu0 %v384
            %v390 = vpop.xlane.xlu0 %389
            %391 = vmax.xlane.f32.xlu0 %v385
            %v392 = vpop.xlane.xlu0 %391
            %v393 = vsub.f32 %v384, %v390
            %v394 = vsub.f32 %v385, %v392
            %v395 = vmul.f32 %v393, 1.442695
            %v396 = vpow.pop %v395
            %v397 = vmul.f32 %v394, 1.442695
            %v398 = vpow.pop %v397
            %v399 = vmul.f32 %v387, %v396
            %v400 = vmul.f32 %v388, %v398
            %401 = vadd.xlane.f32.xlu0 %v399
            %v402 = vpop.xlane.xlu0 %401
            %403 = vadd.xlane.f32.xlu0 %v400
            %v404 = vpop.xlane.xlu0 %403
            %v405 = vlog2.pop %v402
            %v406 = vmul.f32 %v405, 0.6931472
            %v407 = vlog2.pop %v404
            %v408 = vmul.f32 %v407, 0.6931472
            %v409 = vadd.f32 %v390, %v406
            %v410 = vadd.f32 %v392, %v408
            %s411 = scalar_lea.vmem [#allocation4], %s257
            %vm412 = vcmask 7168
            %413 = vst.msk [vmem:[%s411] sm:$0xff] %vm412, %v409
            %414 = vst.msk [vmem:[%s411 + $0x8] sm:$0xff] %vm412, %v410
          $region60: #{tpu_custom_call.1} parent=55 // pred_fallthru
            _
          %s415 = scalar_lea.vmem [#allocation4], %s257
          %v416 = vld [vmem:[%s415] sm:$0xff]
          %v417 = vld [vmem:[%s415 + $0x8] sm:$0xff]
          %419 = vset.pattern.permute.xlu0 0
          %420 = vperm.xlu0 %419, %v416
          %v421 = vpop.permute.xlu0 %420
          %424 = vset.pattern.permute.xlu0 0
          %425 = vperm.xlu0 %424, %v417
          %v426 = vpop.permute.xlu0 %425
          %v428 = vsub.f32 %v327, %v421
          %v429 = vsub.f32 %v330, %v426
          %430 = vst [vmem:[%s249] sm:$0xff] %v428
          %431 = vst [vmem:[%s249 + $0x8] sm:$0xff] %v429
        $region56: #{tpu_custom_call.1} parent=31 // pred_fallthru
          _
        %s432 = sand.u32 %s141, 1
        %s433 = scalar_lea.sflag [#allocation7], %s432
        %s434 = sand.u32 %s141, 1
        %s435 = smul.addr %s434, 16
        %s436 = scalar_lea.vmem [#allocation11], %s435
        // Predicated region
        $region61: #{tpu_custom_call.1} parent=31 // pred_check
          %p437 = pneg %p151
        $region62: #{tpu_custom_call.1} parent=31 // pred_check_branch
          %439 = sbr.rel (%p437) target = $region64
        $region63: #{tpu_custom_call.1} parent=31 // pred_region
          %s440 = smul.u32 %s26, %s28
          %s441 = sadd.s32 %s25, %s440
          %s442 = smul.u32 %s26, %s27
          %s443 = smul.u32 2, %s441
          %s445 = ssub.s32 256, 256
          %446 = vsyncadd %s433, %s445
          %s447 = sadd.s32 %s442, %s443
          %s448 = smul.addr %s447, 128
          %s449 = scalar_lea.hbm %s3, %s448
          %s450 = sshll.u32 %s436, 4
          %s451 = int_to_ptr.vmem [resolvable:$true] %s450
          %456 = dma.vmem_to_hbm [thread:$0]  %s451, 256, %s449, %s433, 128, 128, 8
        $region64: #{tpu_custom_call.1} parent=31 // pred_fallthru
          _
      $region32: #{tpu_custom_call.1} parent=5 // pred_fallthru
        _
      %p457 = scmp.le.s32.totalorder 2, %s14
      // Predicated region
      $region65: #{tpu_custom_call.1} parent=5 // pred_check
        %p458 = pneg %p457
      $region66: #{tpu_custom_call.1} parent=5 // pred_check_branch
        %460 = sbr.rel (%p458) target = $region68
      $region67: #{tpu_custom_call.1} parent=5 // pred_region
        %s461 = ssub.s32 %s14, 2
        // Predicated region
        $region69: #{tpu_custom_call.1} parent=67 // pred_check
          %p462 = pneg %p157
        $region70: #{tpu_custom_call.1} parent=67 // pred_check_branch
          %464 = sbr.rel (%p462) target = $region72
        $region71: #{tpu_custom_call.1} parent=67 // pred_region
          %s465 = sand.u32 %s142, 1
          %s466 = scalar_lea.sflag [#allocation7], %s465
          %s467 = sand.u32 %s142, 1
          %s468 = smul.addr %s467, 16
          %s469 = scalar_lea.vmem [#allocation11], %s468
          %470 = dma.done %s466, 256
        $region72: #{tpu_custom_call.1} parent=67 // pred_fallthru
          _
      $region68: #{tpu_custom_call.1} parent=5 // pred_fallthru
        _
    $region6: #{tpu_custom_call.1} parent=1 // loop_footer
      %s18 = sadd.s32 1, %s14
    $region7: #{tpu_custom_call.1} parent=1 // loop_footer_branch
      %13 = sbr.rel target = $region3
    $region8: #{tpu_custom_call.1} parent=1 // loop_exit
      _
    %471 = vsyncpa [#allocation6], 1
    %s472 = scalar_lea.sflag [#allocation6], 1
    %473 = vsyncpa %s472, 1
    %474 = vsyncpa [#allocation9], 1
    %475 = vsyncpa [#allocation7], 1
    %s476 = scalar_lea.sflag [#allocation7], 1
    %477 = vsyncpa %s476, 1

</llo_original>
